<compile_context>
chip_gen: v5e
topology: v5e:2x2
jax: 0.10.0
libtpu: 0.0.40
codegen_flags: <defaults>
</compile_context>

<pallas_src>
import jax
import jax.numpy as jnp
import numpy as np
from jax.experimental import pallas as pl
from jax.experimental.pallas import tpu as pltpu


def _leaky(x, slope=0.2):
    return jnp.where(x >= 0, x, slope * x)


# ---------------- fused Pallas kernel ----------------

def _splitting_kernel(xe_ref, xf_ref, w1_ref, w2_ref, bias_ref, out_ref,
                      xpad, t1pad):
    # xe_ref: (1, H, W*Ce) f32    xf_ref: (1, H, W*Cf) f32   (Cf == Cout)
    # w1_ref: (3, W*(Ce+Cf), 2*W*Cout) bf16  banded [conv1 | identity] weight
    # w2_ref: (3, W*Cout, W*Cout)      bf16  banded conv2 weight
    # bias_ref: (3, W*Cout) f32  rows = [b1, b2, bid] tiled over pixels
    # out_ref: (1, H, 2*W*Cout) f32  = [common | diff] packed on lanes
    H = xe_ref.shape[1]
    WCe = xe_ref.shape[2]
    WCf = xf_ref.shape[2]
    WCo = t1pad.shape[1]
    K1 = WCe + WCf

    xf = xf_ref[0]                                    # (H, W*Cf) f32, residual

    # --- halo-only zeroing (2 rows per scratch; interior fully overwritten) --
    zrow1 = jnp.zeros((1, K1), jnp.float32)
    xpad[0:1, :] = zrow1
    xpad[H + 1:H + 2, :] = zrow1
    zrow2 = jnp.zeros((1, WCo), jnp.float32)
    t1pad[0:1, :] = zrow2
    t1pad[H + 1:H + 2, :] = zrow2

    # --- lane-dense padded activation: row r holds [evt row | efnet row] -----
    xpad[1:H + 1, 0:WCe] = xe_ref[0]
    xpad[1:H + 1, WCe:K1] = xf

    # --- conv1 (3x3) + 1x1 identity as ONE banded GEMM ------------------------
    # split-K over the 3 vertical shifts (dy); bf16 MXU inputs, f32 accumulate.
    y1 = jnp.zeros((H, 2 * WCo), jnp.float32)
    for dy in range(3):
        y1 = y1 + jnp.dot(xpad[dy:dy + H, :].astype(jnp.bfloat16),
                          w1_ref[dy],
                          preferred_element_type=jnp.float32)
    t1 = _leaky(y1[:, :WCo] + bias_ref[0:1, :])       # (H, W*Cout)
    idout = y1[:, WCo:] + bias_ref[2:3, :]            # (H, W*Cout)

    # --- conv2 (3x3) on t1; t1 + its halo stay resident in VMEM --------------
    t1pad[1:H + 1, :] = t1
    y2 = jnp.zeros((H, WCo), jnp.float32)
    for dy in range(3):
        y2 = y2 + jnp.dot(t1pad[dy:dy + H, :].astype(jnp.bfloat16),
                          w2_ref[dy],
                          preferred_element_type=jnp.float32)

    block = _leaky(y2 + bias_ref[1:2, :]) + idout     # (H, W*Cout)
    common = xf + block                               # Cf == Cout, same layout

    # --- single lane-dense 128-lane store: [common | diff] -------------------
    out_ref[0] = jnp.concatenate([common, block], axis=-1).astype(out_ref.dtype)


# ---------------- wrapper-side weight packing ----------------

def _band_matrix(w, W):
    """w: (3, 3, C, Co) conv weights -> (3, W*C, W*Co).

    For each vertical tap dy, a weight matrix banded along the image-width axis
    so that (H, W*C) @ band[dy] equals the dy-slice of a 3x3 'same' conv.
    Width zero-padding is implicit: out-of-range bands are simply dropped.
    """
    _, _, C, Co = w.shape
    per_dy = []
    for dy in range(3):
        m = jnp.zeros((W, C, W, Co), w.dtype)
        for dx in range(3):
            sel = jnp.eye(W, W, k=1 - dx, dtype=w.dtype)   # sel[j_in, j]
            m = m + jnp.einsum("ab,cd->acbd", sel, w[dy, dx])
        per_dy.append(m.reshape(W * C, W * Co))
    return jnp.stack(per_dy, axis=0)


def _blockdiag_matrix(w, W):
    """w: (C, Co) 1x1 weights -> (W*C, W*Co) per-pixel block-diagonal matrix."""
    C, Co = w.shape
    sel = jnp.eye(W, dtype=w.dtype)
    return jnp.einsum("ab,cd->acbd", sel, w).reshape(W * C, W * Co)


# ---------------- pallas_call wrapper ----------------

@jax.jit
def splitting_block_nhwc(x_evt, x_ef, params):
    """x_evt: (B,H,W,Ce)  x_ef: (B,H,W,Cf)  -> (common, diff) NHWC (B,H,W,Cout)."""
    B, H, W, Ce = x_evt.shape
    Cf = x_ef.shape[-1]
    Cout = params["w1"].shape[-1]
    assert Cf == Cout, "efnet channels must equal block output channels"

    # --- consolidate 10 weight/bias inputs into 3 pre-packed arrays ----------
    w1e = _band_matrix(params["w1"][:, :, :Ce, :], W)        # (3, W*Ce, W*Cout)
    w1f = _band_matrix(params["w1"][:, :, Ce:, :], W)        # (3, W*Cf, W*Cout)
    conv1_band = jnp.concatenate([w1e, w1f], axis=1)         # (3, W*(Ce+Cf), W*Cout)
    id_band = jnp.concatenate(
        [_blockdiag_matrix(params["wid"][:Ce, :], W),
         _blockdiag_matrix(params["wid"][Ce:, :], W)], axis=0)
    id_stack = jnp.stack([jnp.zeros_like(id_band), id_band,
                          jnp.zeros_like(id_band)], axis=0)  # identity only at dy=1
    w1_packed = jnp.concatenate([conv1_band, id_stack],
                                axis=2).astype(jnp.bfloat16)  # (3, K1, 2*W*Cout)
    w2_packed = _band_matrix(params["w2"], W).astype(jnp.bfloat16)  # (3, W*Co, W*Co)
    bias = jnp.stack([jnp.tile(params["b1"][0], W),
                      jnp.tile(params["b2"][0], W),
                      jnp.tile(params["bid"][0], W)], axis=0)       # (3, W*Cout) f32

    # --- lane-dense activations (channels folded into the lane axis with W) --
    xe = x_evt.reshape(B, H, W * Ce)
    xf = x_ef.reshape(B, H, W * Cf)

    K1 = W * (Ce + Cf)
    N1 = 2 * W * Cout

    out = pl.pallas_call(
        _splitting_kernel,
        out_shape=jax.ShapeDtypeStruct((B, H, 2 * W * Cout), jnp.float32),
        grid=(B,),
        in_specs=[
            pl.BlockSpec((1, H, W * Ce), lambda b: (b, 0, 0)),
            pl.BlockSpec((1, H, W * Cf), lambda b: (b, 0, 0)),
            pl.BlockSpec((3, K1, N1), lambda b: (0, 0, 0)),
            pl.BlockSpec((3, W * Cout, W * Cout), lambda b: (0, 0, 0)),
            pl.BlockSpec((3, W * Cout), lambda b: (0, 0)),
        ],
        out_specs=pl.BlockSpec((1, H, 2 * W * Cout), lambda b: (b, 0, 0)),
        scratch_shapes=[
            pltpu.VMEM((H + 2, K1), jnp.float32),        # row-padded [evt|ef]
            pltpu.VMEM((H + 2, W * Cout), jnp.float32),  # row-padded t1
        ],
        compiler_params=pltpu.CompilerParams(
            dimension_semantics=("parallel",)),
    )(xe, xf, w1_packed, w2_packed, bias)

    common = out[:, :, :W * Cout].reshape(B, H, W, Cout)
    diff = out[:, :, W * Cout:].reshape(B, H, W, Cout)
    return common, diff


# ---------------- parameter init (deterministic, synthetic) ----------------

def init_unet_conv_block(key, in_c, out_c):
    ks = jax.random.split(key, 6)
    return {
        "w1": 0.1 * jax.random.normal(ks[0], (3, 3, in_c, out_c), jnp.float32),
        "b1": 0.01 * jax.random.normal(ks[1], (1, out_c), jnp.float32),
        "w2": 0.1 * jax.random.normal(ks[2], (3, 3, out_c, out_c), jnp.float32),
        "b2": 0.01 * jax.random.normal(ks[3], (1, out_c), jnp.float32),
        "wid": 0.1 * jax.random.normal(ks[4], (in_c, out_c), jnp.float32),
        "bid": 0.01 * jax.random.normal(ks[5], (1, out_c), jnp.float32),
    }


class CorrFeatSplittingModulesPallas:
    """Mirrors CorrFeatSplittingModules.__init__/forward."""

    def __init__(self, evt_rec_encoder_output_sizes, num_encoders, efnet_wf,
                 efnet_depth, key):
        self.num_stages = min(num_encoders, efnet_depth)
        self.evt_rec_num_channels = list(evt_rec_encoder_output_sizes)
        self.efnet_num_channels = [2 ** i * efnet_wf for i in range(efnet_depth)]
        self.stage_params = []
        for i in range(self.num_stages):
            key, k_merge, k_split = jax.random.split(key, 3)
            in_c = self.evt_rec_num_channels[i] + self.efnet_num_channels[i]
            out_c = self.efnet_num_channels[i]
            self.stage_params.append({
                "merge": init_unet_conv_block(k_merge, in_c, out_c),
                # split_conv exists in the original __init__ but is never used
                # in forward (original code calls merge_conv for both outputs).
                "split": init_unet_conv_block(k_split, in_c, out_c),
            })

    def __call__(self, f_evt_rec, f_efnet, stage_idx):
        # f_evt_rec, f_efnet: NCHW float32 (PyTorch convention).
        p = self.stage_params[stage_idx]["merge"]
        B, Ce, He, We = f_evt_rec.shape
        _, Cf, H, W = f_efnet.shape
        if (He, We) != (H, W):
            # glue: matches F.interpolate(mode='bilinear', align_corners=False)
            f_evt_rec = jax.image.resize(f_evt_rec, (B, Ce, H, W), method="bilinear")

        # layout: NCHW -> NHWC for the kernel (boundary transposes stay in XLA)
        x_evt = jnp.transpose(f_evt_rec, (0, 2, 3, 1)).astype(jnp.float32)
        x_ef = jnp.transpose(f_efnet, (0, 2, 3, 1)).astype(jnp.float32)

        common, diff = splitting_block_nhwc(x_evt, x_ef, p)

        # back to NCHW
        return (jnp.transpose(common, (0, 3, 1, 2)),
                jnp.transpose(diff, (0, 3, 1, 2)))


# ---------------- pure-JAX reference for a quick correctness check ----------------

def _ref_unet_conv_block(x_nhwc, p):
    def conv3(x, w, b):
        y = jax.lax.conv_general_dilated(
            x, w, (1, 1), [(1, 1), (1, 1)],
            dimension_numbers=("NHWC", "HWIO", "NHWC"),
            precision=jax.lax.Precision.HIGHEST)
        return y + b.reshape(1, 1, 1, -1)

    t = _leaky(conv3(x_nhwc, p["w1"], p["b1"]))
    t = _leaky(conv3(t, p["w2"], p["b2"]))
    idout = jnp.einsum("bhwc,cd->bhwd", x_nhwc, p["wid"],
                       precision=jax.lax.Precision.HIGHEST) + p["bid"].reshape(1, 1, 1, -1)
    return t + idout


def _ref_forward(mod, f_evt_rec, f_efnet, stage_idx):
    p = mod.stage_params[stage_idx]["merge"]
    x_evt = jnp.transpose(f_evt_rec, (0, 2, 3, 1))
    x_ef = jnp.transpose(f_efnet, (0, 2, 3, 1))
    cat = jnp.concatenate([x_evt, x_ef], axis=-1)
    block = _ref_unet_conv_block(cat, p)
    common = x_ef + block
    diff = block
    return (jnp.transpose(common, (0, 3, 1, 2)),
            jnp.transpose(diff, (0, 3, 1, 2)))


if __name__ == "__main__":
    key = jax.random.PRNGKey(0)
    k_model, k_evt, k_ef = jax.random.split(key, 3)

    # Small synthetic config: evt_rec encoder sizes [4, 8], efnet wf=4, depth=2.
    mod = CorrFeatSplittingModulesPallas(
        evt_rec_encoder_output_sizes=[4, 8],
        num_encoders=2,
        efnet_wf=4,
        efnet_depth=2,
        key=k_model,
    )

    B, H, W = 2, 16, 16
    stage_idx = 0
    f_evt_rec = jax.random.normal(
        k_evt, (B, mod.evt_rec_num_channels[stage_idx], H, W), jnp.float32)
    f_efnet = jax.random.normal(
        k_ef, (B, mod.efnet_num_channels[stage_idx], H, W), jnp.float32)

    common, diff = mod(f_evt_rec, f_efnet, stage_idx)
    jax.block_until_ready((common, diff))

    # correctness check against a plain-JAX reference (tolerance loosened for
    # the bf16 MXU inputs, per the review note).
    ref_common, ref_diff = _ref_forward(mod, f_evt_rec, f_efnet, stage_idx)
    assert common.shape == (B, mod.efnet_num_channels[stage_idx], H, W)
    assert diff.shape == (B, mod.efnet_num_channels[stage_idx], H, W)
    assert np.allclose(np.asarray(common), np.asarray(ref_common), atol=5e-2, rtol=5e-2)
    assert np.allclose(np.asarray(diff), np.asarray(ref_diff), atol=5e-2, rtol=5e-2)

    print("KERNEL_OK")
</pallas_src>

<mosaic_0001>
module attributes {stable_mosaic.version = 11 : i64} {
  func.func @_splitting_kernel(%arg0: i32, %arg1: memref<1x16x64xf32, #tpu.memory_space<vmem>>, %arg2: memref<1x16x64xf32, #tpu.memory_space<vmem>>, %arg3: memref<3x128x128xbf16, #tpu.memory_space<vmem>>, %arg4: memref<3x64x64xbf16, #tpu.memory_space<vmem>>, %arg5: memref<3x64xf32, #tpu.memory_space<vmem>>, %arg6: memref<1x16x128xf32, #tpu.memory_space<vmem>>, %arg7: memref<18x128xf32, #tpu.memory_space<vmem>>, %arg8: memref<18x64xf32, #tpu.memory_space<vmem>>) attributes {dimension_semantics = [#tpu.dimension_semantics<parallel>], iteration_bounds = array<i64: 2>, scalar_prefetch = 0 : i64, scratch_operands = 2 : i64, tpu.core_type = #tpu.core_type<tc>, window_params = [{transform_indices = @transform_0, window_bounds = array<i64: 1, 16, 64>}, {transform_indices = @transform_1, window_bounds = array<i64: 1, 16, 64>}, {pipeline_mode = #tpu.pipeline_mode<synchronous>, transform_indices = @transform_2, window_bounds = array<i64: 3, 128, 128>}, {pipeline_mode = #tpu.pipeline_mode<synchronous>, transform_indices = @transform_3, window_bounds = array<i64: 3, 64, 64>}, {pipeline_mode = #tpu.pipeline_mode<synchronous>, transform_indices = @transform_4, window_bounds = array<i64: 3, 64>}, {transform_indices = @transform_5, window_bounds = array<i64: 1, 16, 128>}]} {
    %c0 = arith.constant 0 : index
    %c0_0 = arith.constant 0 : index
    %c0_1 = arith.constant 0 : index
    %0 = vector.load %arg2[%c0, %c0_0, %c0_1] : memref<1x16x64xf32, #tpu.memory_space<vmem>>, vector<1x16x64xf32>
    %1 = vector.shape_cast %0 : vector<1x16x64xf32> to vector<16x64xf32>
    %cst = arith.constant 0.000000e+00 : f32
    %2 = vector.broadcast %cst : f32 to vector<1x128xf32>
    %c0_2 = arith.constant 0 : index
    %c0_3 = arith.constant 0 : index
    %3 = vector.load %arg7[%c0_2, %c0_3] : memref<18x128xf32, #tpu.memory_space<vmem>>, vector<1x128xf32>
    tpu.vector_store %arg7[%c0_2, %c0_3], %2 {strides = array<i32>} : memref<18x128xf32, #tpu.memory_space<vmem>>, vector<1x128xf32>,
    %c17 = arith.constant 17 : index
    %c0_4 = arith.constant 0 : index
    %4 = vector.load %arg7[%c17, %c0_4] : memref<18x128xf32, #tpu.memory_space<vmem>>, vector<1x128xf32>
    tpu.vector_store %arg7[%c17, %c0_4], %2 {strides = array<i32>} : memref<18x128xf32, #tpu.memory_space<vmem>>, vector<1x128xf32>,
    %cst_5 = arith.constant 0.000000e+00 : f32
    %5 = vector.broadcast %cst_5 : f32 to vector<1x64xf32>
    %c0_6 = arith.constant 0 : index
    %c0_7 = arith.constant 0 : index
    %6 = vector.load %arg8[%c0_6, %c0_7] : memref<18x64xf32, #tpu.memory_space<vmem>>, vector<1x64xf32>
    tpu.vector_store %arg8[%c0_6, %c0_7], %5 {strides = array<i32>} : memref<18x64xf32, #tpu.memory_space<vmem>>, vector<1x64xf32>,
    %c17_8 = arith.constant 17 : index
    %c0_9 = arith.constant 0 : index
    %7 = vector.load %arg8[%c17_8, %c0_9] : memref<18x64xf32, #tpu.memory_space<vmem>>, vector<1x64xf32>
    tpu.vector_store %arg8[%c17_8, %c0_9], %5 {strides = array<i32>} : memref<18x64xf32, #tpu.memory_space<vmem>>, vector<1x64xf32>,
    %c0_10 = arith.constant 0 : index
    %c0_11 = arith.constant 0 : index
    %c0_12 = arith.constant 0 : index
    %8 = vector.load %arg1[%c0_10, %c0_11, %c0_12] : memref<1x16x64xf32, #tpu.memory_space<vmem>>, vector<1x16x64xf32>
    %9 = vector.shape_cast %8 : vector<1x16x64xf32> to vector<16x64xf32>
    %c1 = arith.constant 1 : index
    %c0_13 = arith.constant 0 : index
    %10 = vector.load %arg7[%c1, %c0_13] : memref<18x128xf32, #tpu.memory_space<vmem>>, vector<16x64xf32>
    tpu.vector_store %arg7[%c1, %c0_13], %9 {strides = array<i32>} : memref<18x128xf32, #tpu.memory_space<vmem>>, vector<16x64xf32>,
    %c1_14 = arith.constant 1 : index
    %c64 = arith.constant 64 : index
    %11 = vector.load %arg7[%c1_14, %c64] : memref<18x128xf32, #tpu.memory_space<vmem>>, vector<16x64xf32>
    tpu.vector_store %arg7[%c1_14, %c64], %1 {strides = array<i32>} : memref<18x128xf32, #tpu.memory_space<vmem>>, vector<16x64xf32>,
    %cst_15 = arith.constant 0.000000e+00 : f32
    %12 = vector.broadcast %cst_15 : f32 to vector<16x128xf32>
    %c0_16 = arith.constant 0 : index
    %c0_17 = arith.constant 0 : index
    %13 = vector.load %arg7[%c0_16, %c0_17] : memref<18x128xf32, #tpu.memory_space<vmem>>, vector<16x128xf32>
    %14 = arith.truncf %13 : vector<16x128xf32> to vector<16x128xbf16>
    %c0_18 = arith.constant 0 : index
    %c0_19 = arith.constant 0 : index
    %c0_20 = arith.constant 0 : index
    %15 = vector.load %arg3[%c0_18, %c0_19, %c0_20] : memref<3x128x128xbf16, #tpu.memory_space<vmem>>, vector<1x128x128xbf16>
    %16 = vector.shape_cast %15 : vector<1x128x128xbf16> to vector<128x128xbf16>
    %cst_21 = arith.constant dense<0.000000e+00> : vector<16x128xf32>
    %17 = tpu.matmul %14, %16, %cst_21 {dimension_numbers = #tpu.dot_dimension_numbers<[1], [0], [0], [1], [0, 0, 1, 1], [], []>} : vector<16x128xbf16>, vector<128x128xbf16>, vector<16x128xf32> -> vector<16x128xf32>
    %18 = arith.addf %12, %17 : vector<16x128xf32>
    %c1_22 = arith.constant 1 : index
    %c0_23 = arith.constant 0 : index
    %19 = vector.load %arg7[%c1_22, %c0_23] : memref<18x128xf32, #tpu.memory_space<vmem>>, vector<16x128xf32>
    %20 = arith.truncf %19 : vector<16x128xf32> to vector<16x128xbf16>
    %c1_24 = arith.constant 1 : index
    %c0_25 = arith.constant 0 : index
    %c0_26 = arith.constant 0 : index
    %21 = vector.load %arg3[%c1_24, %c0_25, %c0_26] : memref<3x128x128xbf16, #tpu.memory_space<vmem>>, vector<1x128x128xbf16>
    %22 = vector.shape_cast %21 : vector<1x128x128xbf16> to vector<128x128xbf16>
    %cst_27 = arith.constant dense<0.000000e+00> : vector<16x128xf32>
    %23 = tpu.matmul %20, %22, %cst_27 {dimension_numbers = #tpu.dot_dimension_numbers<[1], [0], [0], [1], [0, 0, 1, 1], [], []>} : vector<16x128xbf16>, vector<128x128xbf16>, vector<16x128xf32> -> vector<16x128xf32>
    %24 = arith.addf %18, %23 : vector<16x128xf32>
    %c2 = arith.constant 2 : index
    %c0_28 = arith.constant 0 : index
    %25 = vector.load %arg7[%c2, %c0_28] : memref<18x128xf32, #tpu.memory_space<vmem>>, vector<16x128xf32>
    %26 = arith.truncf %25 : vector<16x128xf32> to vector<16x128xbf16>
    %c2_29 = arith.constant 2 : index
    %c0_30 = arith.constant 0 : index
    %c0_31 = arith.constant 0 : index
    %27 = vector.load %arg3[%c2_29, %c0_30, %c0_31] : memref<3x128x128xbf16, #tpu.memory_space<vmem>>, vector<1x128x128xbf16>
    %28 = vector.shape_cast %27 : vector<1x128x128xbf16> to vector<128x128xbf16>
    %cst_32 = arith.constant dense<0.000000e+00> : vector<16x128xf32>
    %29 = tpu.matmul %26, %28, %cst_32 {dimension_numbers = #tpu.dot_dimension_numbers<[1], [0], [0], [1], [0, 0, 1, 1], [], []>} : vector<16x128xbf16>, vector<128x128xbf16>, vector<16x128xf32> -> vector<16x128xf32>
    %30 = arith.addf %24, %29 : vector<16x128xf32>
    %31 = vector.extract_strided_slice %30 {offsets = [0, 0], sizes = [16, 64], strides = [1, 1]} : vector<16x128xf32> to vector<16x64xf32>
    %c0_33 = arith.constant 0 : index
    %c0_34 = arith.constant 0 : index
    %32 = vector.load %arg5[%c0_33, %c0_34] : memref<3x64xf32, #tpu.memory_space<vmem>>, vector<1x64xf32>
    %33 = vector.broadcast %32 : vector<1x64xf32> to vector<16x64xf32>
    %34 = arith.addf %31, %33 : vector<16x64xf32>
    %cst_35 = arith.constant 0.000000e+00 : f32
    %35 = vector.broadcast %cst_35 : f32 to vector<16x64xf32>
    %36 = arith.cmpf oge, %34, %35 : vector<16x64xf32>
    %cst_36 = arith.constant 2.000000e-01 : f32
    %37 = vector.broadcast %cst_36 : f32 to vector<16x64xf32>
    %38 = arith.mulf %37, %34 : vector<16x64xf32>
    %39 = arith.select %36, %34, %38 : vector<16x64xi1>, vector<16x64xf32>
    %40 = vector.extract_strided_slice %30 {offsets = [0, 64], sizes = [16, 64], strides = [1, 1]} : vector<16x128xf32> to vector<16x64xf32>
    %c2_37 = arith.constant 2 : index
    %c0_38 = arith.constant 0 : index
    %41 = vector.load %arg5[%c2_37, %c0_38] : memref<3x64xf32, #tpu.memory_space<vmem>>, vector<1x64xf32>
    %42 = vector.broadcast %41 : vector<1x64xf32> to vector<16x64xf32>
    %43 = arith.addf %40, %42 : vector<16x64xf32>
    %c1_39 = arith.constant 1 : index
    %c0_40 = arith.constant 0 : index
    %44 = vector.load %arg8[%c1_39, %c0_40] : memref<18x64xf32, #tpu.memory_space<vmem>>, vector<16x64xf32>
    tpu.vector_store %arg8[%c1_39, %c0_40], %39 {strides = array<i32>} : memref<18x64xf32, #tpu.memory_space<vmem>>, vector<16x64xf32>,
    %cst_41 = arith.constant 0.000000e+00 : f32
    %45 = vector.broadcast %cst_41 : f32 to vector<16x64xf32>
    %c0_42 = arith.constant 0 : index
    %c0_43 = arith.constant 0 : index
    %46 = vector.load %arg8[%c0_42, %c0_43] : memref<18x64xf32, #tpu.memory_space<vmem>>, vector<16x64xf32>
    %47 = arith.truncf %46 : vector<16x64xf32> to vector<16x64xbf16>
    %c0_44 = arith.constant 0 : index
    %c0_45 = arith.constant 0 : index
    %c0_46 = arith.constant 0 : index
    %48 = vector.load %arg4[%c0_44, %c0_45, %c0_46] : memref<3x64x64xbf16, #tpu.memory_space<vmem>>, vector<1x64x64xbf16>
    %49 = vector.shape_cast %48 : vector<1x64x64xbf16> to vector<64x64xbf16>
    %cst_47 = arith.constant dense<0.000000e+00> : vector<16x64xf32>
    %50 = tpu.matmul %47, %49, %cst_47 {dimension_numbers = #tpu.dot_dimension_numbers<[1], [0], [0], [1], [0, 0, 1, 1], [], []>} : vector<16x64xbf16>, vector<64x64xbf16>, vector<16x64xf32> -> vector<16x64xf32>
    %51 = arith.addf %45, %50 : vector<16x64xf32>
    %c1_48 = arith.constant 1 : index
    %c0_49 = arith.constant 0 : index
    %52 = vector.load %arg8[%c1_48, %c0_49] : memref<18x64xf32, #tpu.memory_space<vmem>>, vector<16x64xf32>
    %53 = arith.truncf %52 : vector<16x64xf32> to vector<16x64xbf16>
    %c1_50 = arith.constant 1 : index
    %c0_51 = arith.constant 0 : index
    %c0_52 = arith.constant 0 : index
    %54 = vector.load %arg4[%c1_50, %c0_51, %c0_52] : memref<3x64x64xbf16, #tpu.memory_space<vmem>>, vector<1x64x64xbf16>
    %55 = vector.shape_cast %54 : vector<1x64x64xbf16> to vector<64x64xbf16>
    %cst_53 = arith.constant dense<0.000000e+00> : vector<16x64xf32>
    %56 = tpu.matmul %53, %55, %cst_53 {dimension_numbers = #tpu.dot_dimension_numbers<[1], [0], [0], [1], [0, 0, 1, 1], [], []>} : vector<16x64xbf16>, vector<64x64xbf16>, vector<16x64xf32> -> vector<16x64xf32>
    %57 = arith.addf %51, %56 : vector<16x64xf32>
    %c2_54 = arith.constant 2 : index
    %c0_55 = arith.constant 0 : index
    %58 = vector.load %arg8[%c2_54, %c0_55] : memref<18x64xf32, #tpu.memory_space<vmem>>, vector<16x64xf32>
    %59 = arith.truncf %58 : vector<16x64xf32> to vector<16x64xbf16>
    %c2_56 = arith.constant 2 : index
    %c0_57 = arith.constant 0 : index
    %c0_58 = arith.constant 0 : index
    %60 = vector.load %arg4[%c2_56, %c0_57, %c0_58] : memref<3x64x64xbf16, #tpu.memory_space<vmem>>, vector<1x64x64xbf16>
    %61 = vector.shape_cast %60 : vector<1x64x64xbf16> to vector<64x64xbf16>
    %cst_59 = arith.constant dense<0.000000e+00> : vector<16x64xf32>
    %62 = tpu.matmul %59, %61, %cst_59 {dimension_numbers = #tpu.dot_dimension_numbers<[1], [0], [0], [1], [0, 0, 1, 1], [], []>} : vector<16x64xbf16>, vector<64x64xbf16>, vector<16x64xf32> -> vector<16x64xf32>
    %63 = arith.addf %57, %62 : vector<16x64xf32>
    %c1_60 = arith.constant 1 : index
    %c0_61 = arith.constant 0 : index
    %64 = vector.load %arg5[%c1_60, %c0_61] : memref<3x64xf32, #tpu.memory_space<vmem>>, vector<1x64xf32>
    %65 = vector.broadcast %64 : vector<1x64xf32> to vector<16x64xf32>
    %66 = arith.addf %63, %65 : vector<16x64xf32>
    %cst_62 = arith.constant 0.000000e+00 : f32
    %67 = vector.broadcast %cst_62 : f32 to vector<16x64xf32>
    %68 = arith.cmpf oge, %66, %67 : vector<16x64xf32>
    %cst_63 = arith.constant 2.000000e-01 : f32
    %69 = vector.broadcast %cst_63 : f32 to vector<16x64xf32>
    %70 = arith.mulf %69, %66 : vector<16x64xf32>
    %71 = arith.select %68, %66, %70 : vector<16x64xi1>, vector<16x64xf32>
    %72 = arith.addf %71, %43 : vector<16x64xf32>
    %73 = arith.addf %1, %72 : vector<16x64xf32>
    %74 = tpu.concatenate %73, %72 in 1 : vector<16x64xf32>, vector<16x64xf32> -> vector<16x128xf32>
    %c0_64 = arith.constant 0 : index
    %c0_65 = arith.constant 0 : index
    %c0_66 = arith.constant 0 : index
    %75 = vector.load %arg6[%c0_64, %c0_65, %c0_66] : memref<1x16x128xf32, #tpu.memory_space<vmem>>, vector<1x16x128xf32>
    %76 = vector.shape_cast %75 : vector<1x16x128xf32> to vector<16x128xf32>
    %77 = vector.shape_cast %74 : vector<16x128xf32> to vector<1x16x128xf32>
    tpu.vector_store %arg6[%c0_64, %c0_65, %c0_66], %77 {strides = array<i32>} : memref<1x16x128xf32, #tpu.memory_space<vmem>>, vector<1x16x128xf32>,
    return
  }
  func.func @transform_0(%arg0: i32) -> (i32, i32, i32) {
    %c0_i32 = arith.constant 0 : i32
    %c0_i32_0 = arith.constant 0 : i32
    %c0_i32_1 = arith.constant 0 : i32
    return %arg0, %c0_i32, %c0_i32_0 : i32, i32, i32
  }
  func.func @transform_1(%arg0: i32) -> (i32, i32, i32) {
    %c0_i32 = arith.constant 0 : i32
    %c0_i32_0 = arith.constant 0 : i32
    %c0_i32_1 = arith.constant 0 : i32
    return %arg0, %c0_i32, %c0_i32_0 : i32, i32, i32
  }
  func.func @transform_2(%arg0: i32) -> (i32, i32, i32) {
    %c0_i32 = arith.constant 0 : i32
    %c0_i32_0 = arith.constant 0 : i32
    %c0_i32_1 = arith.constant 0 : i32
    %c0_i32_2 = arith.constant 0 : i32
    return %c0_i32, %c0_i32_0, %c0_i32_1 : i32, i32, i32
  }
  func.func @transform_3(%arg0: i32) -> (i32, i32, i32) {
    %c0_i32 = arith.constant 0 : i32
    %c0_i32_0 = arith.constant 0 : i32
    %c0_i32_1 = arith.constant 0 : i32
    %c0_i32_2 = arith.constant 0 : i32
    return %c0_i32, %c0_i32_0, %c0_i32_1 : i32, i32, i32
  }
  func.func @transform_4(%arg0: i32) -> (i32, i32) {
    %c0_i32 = arith.constant 0 : i32
    %c0_i32_0 = arith.constant 0 : i32
    %c0_i32_1 = arith.constant 0 : i32
    return %c0_i32, %c0_i32_0 : i32, i32
  }
  func.func @transform_5(%arg0: i32) -> (i32, i32, i32) {
    %c0_i32 = arith.constant 0 : i32
    %c0_i32_0 = arith.constant 0 : i32
    %c0_i32_1 = arith.constant 0 : i32
    return %arg0, %c0_i32, %c0_i32_0 : i32, i32, i32
  }
}

</mosaic_0001>

<llo_original>
// kernel: tile.14
$region0: #{tile.14}
  #allocation0 [shape = 's32[1]{0}', space=sflag, size = 0x4, scoped, tag = 'scoped memory for tile.14']
  %s0 = inlined_call_operand.vmem [shape: f32[4], index: 0, kind: input, shape index: {}]
  %s1 = inlined_call_operand.vmem [shape: f32[16,4], index: 1, kind: output, shape index: {}]
  // Predicated region
  $region2: #{tile.14} parent=0 // pred_check
    _
  $region3: #{tile.14} parent=0 // pred_check_branch
    %3 = sbr.rel (0) target = $region5
  $region4: #{tile.14} parent=0 // pred_region
    _
  $region5: #{tile.14} parent=0 // pred_fallthru
    _
  %v4 = vld [vmem:[%s0] ss:$0 sm:$0xff]
  %5 = vst [vmem:[%s1] sm:$0xff] %v4
  %s6 = scalar_lea.vmem %s1, 8
  %7 = vst [vmem:[%s6] sm:$0xff] %v4

// kernel: tile.21
$region0: #{tile.21}
  %s0 = inlined_call_operand.vmem [shape: f32[16,4], index: 0, kind: input, shape index: {}]
  %s1 = inlined_call_operand.vmem [shape: f32[1,64], index: 1, kind: output, shape index: {}]
  $region1: #{tile.21} parent=0
    #allocation0 [shape = 'u8[4096]{0}', space=vmem, size = 0x1000, scoped, tag = 'scoped mem for output reshape']
    %v2 = vld [vmem:[%s0] sm:$0x1]
    %vm3 = vcmask 31744
    %4 = vst.msk [vmem:[#allocation0] sm:$0x1] %vm3, %v2
    %s5 = scalar_lea.vmem %s0, 15
    %v6 = vld [vmem:[%s5] sm:$0x1]
    %7 = vrot.lane.b32.xlu0 %v6, 60
    %v8 = vpop.permute.xlu0 %7
    %vm9 = vcmask 523744
    %10 = vst.msk [vmem:[#allocation0] sm:$0x1] %vm9, %v8
    %s11 = scalar_lea.vmem %s0, 14
    %v12 = vld [vmem:[%s11] sm:$0x1]
    %13 = vrot.lane.b32.xlu0 %v12, 56
    %v14 = vpop.permute.xlu0 %13
    %vm15 = vcmask 490944
    %16 = vst.msk [vmem:[#allocation0] sm:$0x1] %vm15, %v14
    %s17 = scalar_lea.vmem %s0, 13
    %v18 = vld [vmem:[%s17] sm:$0x1]
    %19 = vrot.lane.b32.xlu0 %v18, 52
    %v20 = vpop.permute.xlu0 %19
    %vm21 = vcmask 458144
    %22 = vst.msk [vmem:[#allocation0] sm:$0x1] %vm21, %v20
    %s23 = scalar_lea.vmem %s0, 12
    %v24 = vld [vmem:[%s23] sm:$0x1]
    %25 = vrot.lane.b32.xlu0 %v24, 48
    %v26 = vpop.permute.xlu0 %25
    %vm27 = vcmask 425344
    %28 = vst.msk [vmem:[#allocation0] sm:$0x1] %vm27, %v26
    %s29 = scalar_lea.vmem %s0, 11
    %v30 = vld [vmem:[%s29] sm:$0x1]
    %31 = vrot.lane.b32.xlu0 %v30, 44
    %v32 = vpop.permute.xlu0 %31
    %vm33 = vcmask 392544
    %34 = vst.msk [vmem:[#allocation0] sm:$0x1] %vm33, %v32
    %s35 = scalar_lea.vmem %s0, 10
    %v36 = vld [vmem:[%s35] sm:$0x1]
    %37 = vrot.lane.b32.xlu0 %v36, 40
    %v38 = vpop.permute.xlu0 %37
    %vm39 = vcmask 359744
    %40 = vst.msk [vmem:[#allocation0] sm:$0x1] %vm39, %v38
    %s41 = scalar_lea.vmem %s0, 9
    %v42 = vld [vmem:[%s41] sm:$0x1]
    %43 = vrot.lane.b32.xlu0 %v42, 36
    %v44 = vpop.permute.xlu0 %43
    %vm45 = vcmask 326944
    %46 = vst.msk [vmem:[#allocation0] sm:$0x1] %vm45, %v44
    %s47 = scalar_lea.vmem %s0, 8
    %v48 = vld [vmem:[%s47] sm:$0x1]
    %49 = vrot.lane.b32.xlu0 %v48, 32
    %v50 = vpop.permute.xlu0 %49
    %vm51 = vcmask 294144
    %52 = vst.msk [vmem:[#allocation0] sm:$0x1] %vm51, %v50
    %s53 = scalar_lea.vmem %s0, 7
    %v54 = vld [vmem:[%s53] sm:$0x1]
    %55 = vrot.lane.b32.xlu0 %v54, 28
    %v56 = vpop.permute.xlu0 %55
    %vm57 = vcmask 261344
    %58 = vst.msk [vmem:[#allocation0] sm:$0x1] %vm57, %v56
    %s59 = scalar_lea.vmem %s0, 6
    %v60 = vld [vmem:[%s59] sm:$0x1]
    %61 = vrot.lane.b32.xlu0 %v60, 24
    %v62 = vpop.permute.xlu0 %61
    %vm63 = vcmask 228544
    %64 = vst.msk [vmem:[#allocation0] sm:$0x1] %vm63, %v62
    %s65 = scalar_lea.vmem %s0, 5
    %v66 = vld [vmem:[%s65] sm:$0x1]
    %67 = vrot.lane.b32.xlu0 %v66, 20
    %v68 = vpop.permute.xlu0 %67
    %vm69 = vcmask 195744
    %70 = vst.msk [vmem:[#allocation0] sm:$0x1] %vm69, %v68
    %s71 = scalar_lea.vmem %s0, 4
    %v72 = vld [vmem:[%s71] sm:$0x1]
    %73 = vrot.lane.b32.xlu0 %v72, 16
    %v74 = vpop.permute.xlu0 %73
    %vm75 = vcmask 162944
    %76 = vst.msk [vmem:[#allocation0] sm:$0x1] %vm75, %v74
    %s77 = scalar_lea.vmem %s0, 3
    %v78 = vld [vmem:[%s77] sm:$0x1]
    %79 = vrot.lane.b32.xlu0 %v78, 12
    %v80 = vpop.permute.xlu0 %79
    %vm81 = vcmask 130144
    %82 = vst.msk [vmem:[#allocation0] sm:$0x1] %vm81, %v80
    %s83 = scalar_lea.vmem %s0, 2
    %v84 = vld [vmem:[%s83] sm:$0x1]
    %85 = vrot.lane.b32.xlu0 %v84, 8
    %v86 = vpop.permute.xlu0 %85
    %vm87 = vcmask 97344
    %88 = vst.msk [vmem:[#allocation0] sm:$0x1] %vm87, %v86
    %s89 = scalar_lea.vmem %s0, 1
    %v90 = vld [vmem:[%s89] sm:$0x1]
    %91 = vrot.lane.b32.xlu0 %v90, 4
    %v92 = vpop.permute.xlu0 %91
    %vm93 = vcmask 64544
    %94 = vst.msk [vmem:[#allocation0] sm:$0x1] %vm93, %v92
    %s96 = ssub.s32 2, 1
    %v97 = vld [vmem:[#allocation0] sm:%s96]
    %s99 = ssub.s32 2, 1
    %100 = vst [vmem:[%s1] sm:%s99] %v97

// kernel: splitting_block_nhwc.1
$region0: #{splitting_block_nhwc.1}
  #allocation0 [shape = 'u32[]', space=smem, size = 0x4, offset = 0x4, fixed_abs, tag = 'smem constant byte address 0x4 - core index']
  #allocation1 [shape = 'u32[72,128]{1,0:T(1,128)}', space=vmem, size = 0x9000, scoped, tag = 'internal scratch']
  #allocation2 [shape = 'f32[18,128]{1,0:T(8,128)}', space=vmem, size = 0x3000, scoped, tag = 'scratch operand']
  #allocation3 [shape = 'f32[18,64]{1,0:T(8,128)}', space=vmem, size = 0x3000, scoped, tag = 'scratch operand']
  %s0 = inlined_call_operand.vmem [shape: f32[2,16,64], index: 0, kind: input, shape index: {}]
  %s1 = inlined_call_operand.vmem [shape: f32[2,16,64], index: 1, kind: input, shape index: {}]
  %s2 = inlined_call_operand.vmem [shape: bf16[3,128,128], index: 2, kind: input, shape index: {}]
  %s3 = inlined_call_operand.vmem [shape: bf16[3,64,64], index: 3, kind: input, shape index: {}]
  %s4 = inlined_call_operand.vmem [shape: f32[3,64], index: 4, kind: input, shape index: {}]
  %s5 = inlined_call_operand.vmem [shape: f32[2,16,128], index: 5, kind: output, shape index: {}]
  %s6 = sld [smem:[#allocation0]]
  $region53: #{splitting_block_nhwc.1} parent=0
    _
  %s8 = ssub.s32 1, %s6
  %s9 = scalar_select 0, %s8, %s6
  loop: start=0, step=1, limit=4
  $region2: #{splitting_block_nhwc.1} parent=0 // loop_pre_header
    _
  $region3: #{splitting_block_nhwc.1} parent=0 // loop_header
    %s11 = sphi 0, %s15
    %p12 = scmp.ge.s32.totalorder %s11, 4
    %s21 = sphi 0, %s23
    %s24 = sphi 0, %s21
    %s25 = sphi 0, %s24
    %s41 = sphi 0, %s25
    %s47 = sphi 0, %s49
    %s50 = sphi 0, %s47
    %s51 = sphi 0, %s50
    %s67 = sphi 0, %s51
    %s71 = sphi 0, %s71
    %s73 = sphi 0, %s71
    %s74 = sphi 0, %s73
    %s88 = sphi 0, %s74
    %s92 = sphi 0, %s92
    %s94 = sphi 0, %s92
    %s95 = sphi 0, %s94
    %s109 = sphi 0, %s95
    %s113 = sphi 0, %s113
    %s115 = sphi 0, %s113
    %s116 = sphi 0, %s115
    %s130 = sphi 0, %s116
    %s136 = sphi 0, %s138
    %s139 = sphi 0, %s136
    %s140 = sphi 0, %s139
    %s156 = sphi 0, %s140
  $region4: #{splitting_block_nhwc.1} parent=0 // loop_header_branch
    %14 = sbr.rel (%p12) target = $region8
  $region5: #{splitting_block_nhwc.1} parent=0 // loop_body
    %s16 = ssub.s32 %s11, 1
    %s17 = ssub.s32 %s11, 2
    %s18 = sadd.s32 %s11, 1
    %s19 = ssub.s32 %s11, %s18
    %p20 = scmp.eq.s32.totalorder %s19, 0
    %s22 = sadd.s32 %s21, 1
    %s23 = scalar_select %p20, %s21, %s22
    %p26 = pneg %p20
    %p27 = scmp.eq.s32.totalorder %s11, 1
    %p28 = por %p26, %p27
    %p29 = scmp.ne.s32.totalorder %s21, %s24
    %p30 = scmp.eq.s32.totalorder %s11, 0
    %p31 = por %p29, %p30
    %p32 = scmp.ne.s32.totalorder %s21, %s24
    %p33 = scmp.eq.s32.totalorder %s16, 1
    %p34 = por %p32, %p33
    %p35 = scmp.ne.s32.totalorder %s24, %s25
    %p36 = scmp.eq.s32.totalorder %s16, 0
    %p37 = por %p35, %p36
    %p38 = scmp.ne.s32.totalorder %s24, %s25
    %p39 = scmp.eq.s32.totalorder %s17, 1
    %p40 = por %p38, %p39
    %p42 = scmp.ne.s32.totalorder %s25, %s41
    %p43 = scmp.eq.s32.totalorder %s17, 0
    %p44 = por %p42, %p43
    %s45 = ssub.s32 %s11, %s18
    %p46 = scmp.eq.s32.totalorder %s45, 0
    %s48 = sadd.s32 %s47, 1
    %s49 = scalar_select %p46, %s47, %s48
    %p52 = pneg %p46
    %p53 = scmp.eq.s32.totalorder %s11, 1
    %p54 = por %p52, %p53
    %p55 = scmp.ne.s32.totalorder %s47, %s50
    %p56 = scmp.eq.s32.totalorder %s11, 0
    %p57 = por %p55, %p56
    %p58 = scmp.ne.s32.totalorder %s47, %s50
    %p59 = scmp.eq.s32.totalorder %s16, 1
    %p60 = por %p58, %p59
    %p61 = scmp.ne.s32.totalorder %s50, %s51
    %p62 = scmp.eq.s32.totalorder %s16, 0
    %p63 = por %p61, %p62
    %p64 = scmp.ne.s32.totalorder %s50, %s51
    %p65 = scmp.eq.s32.totalorder %s17, 1
    %p66 = por %p64, %p65
    %p68 = scmp.ne.s32.totalorder %s51, %s67
    %p69 = scmp.eq.s32.totalorder %s17, 0
    %p70 = por %p68, %p69
    %s72 = sadd.s32 %s71, 1
    %p75 = scmp.eq.s32.totalorder %s11, 1
    %p76 = scmp.ne.s32.totalorder %s71, %s73
    %p77 = scmp.eq.s32.totalorder %s11, 0
    %p78 = por %p76, %p77
    %p79 = scmp.ne.s32.totalorder %s71, %s73
    %p80 = scmp.eq.s32.totalorder %s16, 1
    %p81 = por %p79, %p80
    %p82 = scmp.ne.s32.totalorder %s73, %s74
    %p83 = scmp.eq.s32.totalorder %s16, 0
    %p84 = por %p82, %p83
    %p85 = scmp.ne.s32.totalorder %s73, %s74
    %p86 = scmp.eq.s32.totalorder %s17, 1
    %p87 = por %p85, %p86
    %p89 = scmp.ne.s32.totalorder %s74, %s88
    %p90 = scmp.eq.s32.totalorder %s17, 0
    %p91 = por %p89, %p90
    %s93 = sadd.s32 %s92, 1
    %p96 = scmp.eq.s32.totalorder %s11, 1
    %p97 = scmp.ne.s32.totalorder %s92, %s94
    %p98 = scmp.eq.s32.totalorder %s11, 0
    %p99 = por %p97, %p98
    %p100 = scmp.ne.s32.totalorder %s92, %s94
    %p101 = scmp.eq.s32.totalorder %s16, 1
    %p102 = por %p100, %p101
    %p103 = scmp.ne.s32.totalorder %s94, %s95
    %p104 = scmp.eq.s32.totalorder %s16, 0
    %p105 = por %p103, %p104
    %p106 = scmp.ne.s32.totalorder %s94, %s95
    %p107 = scmp.eq.s32.totalorder %s17, 1
    %p108 = por %p106, %p107
    %p110 = scmp.ne.s32.totalorder %s95, %s109
    %p111 = scmp.eq.s32.totalorder %s17, 0
    %p112 = por %p110, %p111
    %s114 = sadd.s32 %s113, 1
    %p117 = scmp.eq.s32.totalorder %s11, 1
    %p118 = scmp.ne.s32.totalorder %s113, %s115
    %p119 = scmp.eq.s32.totalorder %s11, 0
    %p120 = por %p118, %p119
    %p121 = scmp.ne.s32.totalorder %s113, %s115
    %p122 = scmp.eq.s32.totalorder %s16, 1
    %p123 = por %p121, %p122
    %p124 = scmp.ne.s32.totalorder %s115, %s116
    %p125 = scmp.eq.s32.totalorder %s16, 0
    %p126 = por %p124, %p125
    %p127 = scmp.ne.s32.totalorder %s115, %s116
    %p128 = scmp.eq.s32.totalorder %s17, 1
    %p129 = por %p127, %p128
    %p131 = scmp.ne.s32.totalorder %s116, %s130
    %p132 = scmp.eq.s32.totalorder %s17, 0
    %p133 = por %p131, %p132
    %s134 = ssub.s32 %s11, %s18
    %p135 = scmp.eq.s32.totalorder %s134, 0
    %s137 = sadd.s32 %s136, 1
    %s138 = scalar_select %p135, %s136, %s137
    %p141 = pneg %p135
    %p142 = scmp.eq.s32.totalorder %s11, 1
    %p143 = por %p141, %p142
    %p144 = scmp.ne.s32.totalorder %s136, %s139
    %p145 = scmp.eq.s32.totalorder %s11, 0
    %p146 = por %p144, %p145
    %p147 = scmp.ne.s32.totalorder %s136, %s139
    %p148 = scmp.eq.s32.totalorder %s16, 1
    %p149 = por %p147, %p148
    %p150 = scmp.ne.s32.totalorder %s139, %s140
    %p151 = scmp.eq.s32.totalorder %s16, 0
    %p152 = por %p150, %p151
    %p153 = scmp.ne.s32.totalorder %s139, %s140
    %p154 = scmp.eq.s32.totalorder %s17, 1
    %p155 = por %p153, %p154
    %p157 = scmp.ne.s32.totalorder %s140, %s156
    %p158 = scmp.eq.s32.totalorder %s17, 0
    %p159 = por %p157, %p158
    %p160 = scmp.le.s32.totalorder 1, %s11
    %p161 = scmp.lt.s32.totalorder %s11, 3
    %p162 = pnand %p160, %p161
    %p163 = pneg %p162
    // Predicated region
    $region9: #{splitting_block_nhwc.1} parent=5 // pred_check
      _
    $region10: #{splitting_block_nhwc.1} parent=5 // pred_check_branch
      %165 = sbr.rel (%p162) target = $region12
    $region11: #{splitting_block_nhwc.1} parent=5 // pred_region
      %s166 = ssub.s32 %s11, 1
      // Predicated region
      $region13: #{splitting_block_nhwc.1} parent=11 // pred_check
        %p167 = pneg %p84
      $region14: #{splitting_block_nhwc.1} parent=11 // pred_check_branch
        %169 = sbr.rel (%p167) target = $region16
      $region15: #{splitting_block_nhwc.1} parent=11 // pred_region
        _
      $region16: #{splitting_block_nhwc.1} parent=11 // pred_fallthru
        _
      // Predicated region
      $region17: #{splitting_block_nhwc.1} parent=11 // pred_check
        %p170 = pneg %p105
      $region18: #{splitting_block_nhwc.1} parent=11 // pred_check_branch
        %172 = sbr.rel (%p170) target = $region20
      $region19: #{splitting_block_nhwc.1} parent=11 // pred_region
        _
      $region20: #{splitting_block_nhwc.1} parent=11 // pred_fallthru
        _
      // Predicated region
      $region21: #{splitting_block_nhwc.1} parent=11 // pred_check
        %p173 = pneg %p126
      $region22: #{splitting_block_nhwc.1} parent=11 // pred_check_branch
        %175 = sbr.rel (%p173) target = $region24
      $region23: #{splitting_block_nhwc.1} parent=11 // pred_region
        _
      $region24: #{splitting_block_nhwc.1} parent=11 // pred_fallthru
        _
    $region12: #{splitting_block_nhwc.1} parent=5 // pred_fallthru
      _
    %p176 = scmp.lt.s32.totalorder %s11, 2
    // Predicated region
    $region25: #{splitting_block_nhwc.1} parent=5 // pred_check
      %p177 = pneg %p176
    $region26: #{splitting_block_nhwc.1} parent=5 // pred_check_branch
      %179 = sbr.rel (%p177) target = $region28
    $region27: #{splitting_block_nhwc.1} parent=5 // pred_region
      // Predicated region
      $region29: #{splitting_block_nhwc.1} parent=27 // pred_check
        %p180 = pneg %p31
      $region30: #{splitting_block_nhwc.1} parent=27 // pred_check_branch
        %182 = sbr.rel (%p180) target = $region32
      $region31: #{splitting_block_nhwc.1} parent=27 // pred_region
        %p183 = scmp.lt.s32.totalorder %s11, 1
        %s184 = scalar_select %p183, %s11, 1
        %s185 = smul.addr %s184, 2
        %s186 = smul.addr %s185, 8
        %s187 = scalar_lea.vmem %s0, %s186
      $region32: #{splitting_block_nhwc.1} parent=27 // pred_fallthru
        _
      // Predicated region
      $region33: #{splitting_block_nhwc.1} parent=27 // pred_check
        %p188 = pneg %p57
      $region34: #{splitting_block_nhwc.1} parent=27 // pred_check_branch
        %190 = sbr.rel (%p188) target = $region36
      $region35: #{splitting_block_nhwc.1} parent=27 // pred_region
        %p191 = scmp.lt.s32.totalorder %s11, 1
        %s192 = scalar_select %p191, %s11, 1
        %s193 = smul.addr %s192, 2
        %s194 = smul.addr %s193, 8
        %s195 = scalar_lea.vmem %s1, %s194
      $region36: #{splitting_block_nhwc.1} parent=27 // pred_fallthru
        _
    $region28: #{splitting_block_nhwc.1} parent=5 // pred_fallthru
      _
    %p196 = scmp.le.s32.totalorder 1, %s11
    %p197 = scmp.lt.s32.totalorder %s11, 3
    %p198 = pnand %p196, %p197
    %p199 = pneg %p198
    // Predicated region
    $region37: #{splitting_block_nhwc.1} parent=5 // pred_check
      _
    $region38: #{splitting_block_nhwc.1} parent=5 // pred_check_branch
      %201 = sbr.rel (%p198) target = $region40
    $region39: #{splitting_block_nhwc.1} parent=5 // pred_region
      %s202 = ssub.s32 %s11, 1
      %p203 = scmp.lt.s32.totalorder %s16, 1
      %s204 = scalar_select %p203, %s16, 1
      %s205 = smul.addr %s204, 2
      %s206 = smul.addr %s205, 8
      %s207 = scalar_lea.vmem %s0, %s206
      %p208 = pneg %p37
      %p209 = pneg %p34
      %p210 = scmp.lt.s32.totalorder %s16, 1
      %s211 = scalar_select %p210, %s16, 1
      %s212 = smul.addr %s211, 2
      %s213 = smul.addr %s212, 8
      %s214 = scalar_lea.vmem %s1, %s213
      %p215 = pneg %p63
      %p216 = pneg %p60
      %p217 = pneg %p84
      %p218 = pneg %p81
      %p219 = pneg %p105
      %p220 = pneg %p102
      %p221 = pneg %p126
      %p222 = pneg %p123
      %p223 = pneg %p152
      %p224 = pneg %p149
      %p225 = scmp.lt.s32.totalorder %s16, 1
      %s226 = scalar_select %p225, %s16, 1
      %s227 = smul.addr %s226, 2
      %s228 = smul.addr %s227, 8
      %s229 = scalar_lea.vmem %s5, %s228
      %p230 = scmp.lt.s32.totalorder %s16, 1
      %s231 = scalar_select %p230, %s16, 1
      %s232 = smul.addr %s231, 2
      %s233 = smul.addr %s232, 8
      %s234 = scalar_lea.vmem %s0, %s233
      %p235 = scmp.lt.s32.totalorder %s16, 1
      %s236 = scalar_select %p235, %s16, 1
      %s237 = smul.addr %s236, 2
      %s238 = smul.addr %s237, 8
      %s239 = scalar_lea.vmem %s1, %s238
      %p240 = scmp.lt.s32.totalorder %s16, 1
      %s241 = scalar_select %p240, %s16, 1
      %s242 = smul.addr %s241, 2
      %s243 = smul.addr %s242, 8
      %s244 = scalar_lea.vmem %s5, %s243
      %v246 = vld [vmem:[%s239] sm:$0xff]
      %v247 = vld [vmem:[%s239 + $0x8] sm:$0xff]
      %248 = vst [vmem:[#allocation2] sm:$0x1] 0.0
      %249 = vst [vmem:[#allocation2 + $0x11] sm:$0x1] 0.0
      %vm250 = vcmask 516096
      %251 = vst.msk [vmem:[#allocation3] sm:$0x1] %vm250, 0.0
      %252 = vst.msk [vmem:[#allocation3 + $0x11] sm:$0x1] %vm250, 0.0
      %v253 = vld [vmem:[%s234] sm:$0xff]
      %v254 = vld [vmem:[%s234 + $0x8] sm:$0xff]
      %vm255 = vcmask 523264
      %256 = vst.msk [vmem:[#allocation2 + $0x1] sm:$0xff] %vm255, %v253
      %257 = vst.msk [vmem:[#allocation2 + $0x9] sm:$0xff] %vm255, %v254
      %260 = vrot.lane.b32.xlu0 %v246, 64
      %v261 = vpop.permute.xlu0 %260
      %262 = vrot.lane.b32.xlu0 %v247, 64
      %v263 = vpop.permute.xlu0 %262
      %vm266 = vcmask 1048064
      %267 = vst.msk [vmem:[#allocation2 + $0x1] sm:$0xff] %vm266, %v261
      %268 = vst.msk [vmem:[#allocation2 + $0x9] sm:$0xff] %vm266, %v263
      %v269 = vld [vmem:[#allocation2] sm:$0xff]
      %v270 = vld [vmem:[#allocation2 + $0x8] sm:$0xff]
      %v271 = vpack.c.bf16 %v270, %v269
      %v272 = vld [vmem:[%s2] sm:$0xf]
      %v273 = vld [vmem:[%s2 + $0x4] sm:$0xf]
      %v274 = vld [vmem:[%s2 + $0x8] sm:$0xf]
      %v275 = vld [vmem:[%s2 + $0xc] sm:$0xf]
      %v276 = vld [vmem:[%s2 + $0x10] sm:$0xf]
      %v277 = vld [vmem:[%s2 + $0x14] sm:$0xf]
      %v278 = vld [vmem:[%s2 + $0x18] sm:$0xf]
      %v279 = vld [vmem:[%s2 + $0x1c] sm:$0xf]
      %v280 = vld [vmem:[%s2 + $0x20] sm:$0xf]
      %v281 = vld [vmem:[%s2 + $0x24] sm:$0xf]
      %v282 = vld [vmem:[%s2 + $0x28] sm:$0xf]
      %v283 = vld [vmem:[%s2 + $0x2c] sm:$0xf]
      %v284 = vld [vmem:[%s2 + $0x30] sm:$0xf]
      %v285 = vld [vmem:[%s2 + $0x34] sm:$0xf]
      %v286 = vld [vmem:[%s2 + $0x38] sm:$0xf]
      %v287 = vld [vmem:[%s2 + $0x3c] sm:$0xf]
      %v288 = vld [vmem:[#allocation2 + $0x1] sm:$0xff]
      %v289 = vld [vmem:[#allocation2 + $0x9] sm:$0xff]
      %v290 = vpack.c.bf16 %v289, %v288
      %s291 = scalar_lea.vmem %s2, 64
      %v292 = vld [vmem:[%s291] sm:$0xf]
      %v293 = vld [vmem:[%s291 + $0x4] sm:$0xf]
      %v294 = vld [vmem:[%s291 + $0x8] sm:$0xf]
      %v295 = vld [vmem:[%s291 + $0xc] sm:$0xf]
      %v296 = vld [vmem:[%s291 + $0x10] sm:$0xf]
      %v297 = vld [vmem:[%s291 + $0x14] sm:$0xf]
      %v298 = vld [vmem:[%s291 + $0x18] sm:$0xf]
      %v299 = vld [vmem:[%s291 + $0x1c] sm:$0xf]
      %v300 = vld [vmem:[%s291 + $0x20] sm:$0xf]
      %v301 = vld [vmem:[%s291 + $0x24] sm:$0xf]
      %v302 = vld [vmem:[%s291 + $0x28] sm:$0xf]
      %v303 = vld [vmem:[%s291 + $0x2c] sm:$0xf]
      %v304 = vld [vmem:[%s291 + $0x30] sm:$0xf]
      %v305 = vld [vmem:[%s291 + $0x34] sm:$0xf]
      %v306 = vld [vmem:[%s291 + $0x38] sm:$0xf]
      %v307 = vld [vmem:[%s291 + $0x3c] sm:$0xf]
      %v324 = vunpack.c.l.b16 %v292
      %v325 = vunpack.c.l.b16 %v293
      %v326 = vunpack.c.l.b16 %v294
      %v327 = vunpack.c.l.b16 %v295
      %v328 = vunpack.c.l.b16 %v296
      %v329 = vunpack.c.l.b16 %v297
      %v330 = vunpack.c.l.b16 %v298
      %v331 = vunpack.c.l.b16 %v299
      %v332 = vunpack.c.l.b16 %v300
      %v333 = vunpack.c.l.b16 %v301
      %v334 = vunpack.c.l.b16 %v302
      %v335 = vunpack.c.l.b16 %v303
      %v336 = vunpack.c.l.b16 %v304
      %v337 = vunpack.c.l.b16 %v305
      %v338 = vunpack.c.l.b16 %v306
      %v339 = vunpack.c.l.b16 %v307
      %v340 = vpack.c.b16 %v325, %v324
      %v341 = vpack.c.b16 %v327, %v326
      %v342 = vpack.c.b16 %v329, %v328
      %v343 = vpack.c.b16 %v331, %v330
      %v344 = vpack.c.b16 %v333, %v332
      %v345 = vpack.c.b16 %v335, %v334
      %v346 = vpack.c.b16 %v337, %v336
      %v347 = vpack.c.b16 %v339, %v338
      %356 = vmatpush.bf16.msra.mxu0 %v347
      %357 = vmatpush.bf16.msra.mxu0 %v346
      %358 = vmatpush.bf16.msra.mxu0 %v345
      %359 = vmatpush.bf16.msra.mxu0 %v344
      %360 = vmatpush.bf16.msra.mxu0 %v343
      %361 = vmatpush.bf16.msra.mxu0 %v342
      %362 = vmatpush.bf16.msra.mxu0 %v341
      %363 = vmatpush.bf16.msra.mxu0 %v340
      %364 = vmatmul.bf16.gmra.mxu0 %v290
      %v365 = vpop.f32.mrf.mxu0
      %v366 = vadd.f32 0.0, %v365
      %v367 = vpop.f32.mrf.mxu0
      %v368 = vadd.f32 0.0, %v367
      %369 = vdwg.mxu0
      %v386 = vunpack.c.l.b16 %v272
      %v387 = vunpack.c.l.b16 %v273
      %v388 = vunpack.c.l.b16 %v274
      %v389 = vunpack.c.l.b16 %v275
      %v390 = vunpack.c.l.b16 %v276
      %v391 = vunpack.c.l.b16 %v277
      %v392 = vunpack.c.l.b16 %v278
      %v393 = vunpack.c.l.b16 %v279
      %v394 = vunpack.c.l.b16 %v280
      %v395 = vunpack.c.l.b16 %v281
      %v396 = vunpack.c.l.b16 %v282
      %v397 = vunpack.c.l.b16 %v283
      %v398 = vunpack.c.l.b16 %v284
      %v399 = vunpack.c.l.b16 %v285
      %v400 = vunpack.c.l.b16 %v286
      %v401 = vunpack.c.l.b16 %v287
      %v402 = vpack.c.b16 %v387, %v386
      %v403 = vpack.c.b16 %v389, %v388
      %v404 = vpack.c.b16 %v391, %v390
      %v405 = vpack.c.b16 %v393, %v392
      %v406 = vpack.c.b16 %v395, %v394
      %v407 = vpack.c.b16 %v397, %v396
      %v408 = vpack.c.b16 %v399, %v398
      %v409 = vpack.c.b16 %v401, %v400
      %418 = vmatpush.bf16.msra.mxu0 %v409
      %419 = vmatpush.bf16.msra.mxu0 %v408
      %420 = vmatpush.bf16.msra.mxu0 %v407
      %421 = vmatpush.bf16.msra.mxu0 %v406
      %422 = vmatpush.bf16.msra.mxu0 %v405
      %423 = vmatpush.bf16.msra.mxu0 %v404
      %424 = vmatpush.bf16.msra.mxu0 %v403
      %425 = vmatpush.bf16.msra.mxu0 %v402
      %426 = vmatmul.bf16.gmra.mxu0 %v271
      %v427 = vpop.f32.mrf.mxu0
      %v428 = vadd.f32 %v366, %v427
      %v429 = vpop.f32.mrf.mxu0
      %v430 = vadd.f32 %v368, %v429
      %431 = vdwg.mxu0
      %v432 = vld [vmem:[#allocation2 + $0x2] sm:$0xff]
      %v433 = vld [vmem:[#allocation2 + $0xa] sm:$0xff]
      %v434 = vpack.c.bf16 %v433, %v432
      %s435 = scalar_lea.vmem %s2, 128
      %v436 = vld [vmem:[%s435] sm:$0xf]
      %v437 = vld [vmem:[%s435 + $0x4] sm:$0xf]
      %v438 = vld [vmem:[%s435 + $0x8] sm:$0xf]
      %v439 = vld [vmem:[%s435 + $0xc] sm:$0xf]
      %v440 = vld [vmem:[%s435 + $0x10] sm:$0xf]
      %v441 = vld [vmem:[%s435 + $0x14] sm:$0xf]
      %v442 = vld [vmem:[%s435 + $0x18] sm:$0xf]
      %v443 = vld [vmem:[%s435 + $0x1c] sm:$0xf]
      %v444 = vld [vmem:[%s435 + $0x20] sm:$0xf]
      %v445 = vld [vmem:[%s435 + $0x24] sm:$0xf]
      %v446 = vld [vmem:[%s435 + $0x28] sm:$0xf]
      %v447 = vld [vmem:[%s435 + $0x2c] sm:$0xf]
      %v448 = vld [vmem:[%s435 + $0x30] sm:$0xf]
      %v449 = vld [vmem:[%s435 + $0x34] sm:$0xf]
      %v450 = vld [vmem:[%s435 + $0x38] sm:$0xf]
      %v451 = vld [vmem:[%s435 + $0x3c] sm:$0xf]
      %v468 = vunpack.c.l.b16 %v436
      %v469 = vunpack.c.l.b16 %v437
      %v470 = vunpack.c.l.b16 %v438
      %v471 = vunpack.c.l.b16 %v439
      %v472 = vunpack.c.l.b16 %v440
      %v473 = vunpack.c.l.b16 %v441
      %v474 = vunpack.c.l.b16 %v442
      %v475 = vunpack.c.l.b16 %v443
      %v476 = vunpack.c.l.b16 %v444
      %v477 = vunpack.c.l.b16 %v445
      %v478 = vunpack.c.l.b16 %v446
      %v479 = vunpack.c.l.b16 %v447
      %v480 = vunpack.c.l.b16 %v448
      %v481 = vunpack.c.l.b16 %v449
      %v482 = vunpack.c.l.b16 %v450
      %v483 = vunpack.c.l.b16 %v451
      %v484 = vpack.c.b16 %v469, %v468
      %v485 = vpack.c.b16 %v471, %v470
      %v486 = vpack.c.b16 %v473, %v472
      %v487 = vpack.c.b16 %v475, %v474
      %v488 = vpack.c.b16 %v477, %v476
      %v489 = vpack.c.b16 %v479, %v478
      %v490 = vpack.c.b16 %v481, %v480
      %v491 = vpack.c.b16 %v483, %v482
      %500 = vmatpush.bf16.msra.mxu0 %v491
      %501 = vmatpush.bf16.msra.mxu0 %v490
      %502 = vmatpush.bf16.msra.mxu0 %v489
      %503 = vmatpush.bf16.msra.mxu0 %v488
      %504 = vmatpush.bf16.msra.mxu0 %v487
      %505 = vmatpush.bf16.msra.mxu0 %v486
      %506 = vmatpush.bf16.msra.mxu0 %v485
      %507 = vmatpush.bf16.msra.mxu0 %v484
      %508 = vmatmul.bf16.gmra.mxu0 %v434
      %v509 = vpop.f32.mrf.mxu0
      %v510 = vadd.f32 0.0, %v509
      %v511 = vpop.f32.mrf.mxu0
      %v512 = vadd.f32 0.0, %v511
      %513 = vdwg.mxu0
      %v514 = vadd.f32 %v428, %v510
      %v515 = vadd.f32 %v430, %v512
      %v516 = vld [vmem:[%s4] sm:$0x1]
      %v517 = vperm.slane %v516, 0
      %v518 = vadd.f32 %v514, %v517
      %v519 = vadd.f32 %v515, %v517
      %vm520 = vcmp.ge.f32.partialorder %v518, 0.0
      %vm521 = vcmp.ge.f32.partialorder %v519, 0.0
      %v522 = vmul.f32 %v518, 0.2
      %v523 = vmul.f32 %v519, 0.2
      %v524 = vsel %vm520, %v518, %v522
      %v525 = vsel %vm521, %v519, %v523
      %v526 = vld [vmem:[%s4 + $0x2] sm:$0x1]
      %v527 = vperm.slane %v526, 0
      %529 = vrot.lane.b32.xlu0 %v527, 64
      %v530 = vpop.permute.xlu0 %529
      %v532 = vadd.f32 %v514, %v530
      %v533 = vadd.f32 %v515, %v530
      %534 = vst.msk [vmem:[#allocation3 + $0x1] sm:$0xff] %vm255, %v524
      %535 = vst.msk [vmem:[#allocation3 + $0x9] sm:$0xff] %vm255, %v525
      %v536 = vld [vmem:[#allocation3] sm:$0xff]
      %v537 = vld [vmem:[#allocation3 + $0x8] sm:$0xff]
      %v538 = vpack.c.bf16 %v537, %v536
      %v539 = vld [vmem:[%s3] sm:$0xf]
      %v540 = vld [vmem:[%s3 + $0x4] sm:$0xf]
      %v541 = vld [vmem:[%s3 + $0x8] sm:$0xf]
      %v542 = vld [vmem:[%s3 + $0xc] sm:$0xf]
      %v543 = vld [vmem:[%s3 + $0x10] sm:$0xf]
      %v544 = vld [vmem:[%s3 + $0x14] sm:$0xf]
      %v545 = vld [vmem:[%s3 + $0x18] sm:$0xf]
      %v546 = vld [vmem:[%s3 + $0x1c] sm:$0xf]
      %v547 = vld [vmem:[#allocation3 + $0x1] sm:$0xff]
      %v548 = vld [vmem:[#allocation3 + $0x9] sm:$0xff]
      %v549 = vpack.c.bf16 %v548, %v547
      %s550 = scalar_lea.vmem %s3, 32
      %v551 = vld [vmem:[%s550] sm:$0xf]
      %v552 = vld [vmem:[%s550 + $0x4] sm:$0xf]
      %v553 = vld [vmem:[%s550 + $0x8] sm:$0xf]
      %v554 = vld [vmem:[%s550 + $0xc] sm:$0xf]
      %v555 = vld [vmem:[%s550 + $0x10] sm:$0xf]
      %v556 = vld [vmem:[%s550 + $0x14] sm:$0xf]
      %v557 = vld [vmem:[%s550 + $0x18] sm:$0xf]
      %v558 = vld [vmem:[%s550 + $0x1c] sm:$0xf]
      %v567 = vunpack.c.l.b16 %v551
      %v568 = vunpack.c.l.b16 %v552
      %v569 = vunpack.c.l.b16 %v553
      %v570 = vunpack.c.l.b16 %v554
      %v571 = vunpack.c.l.b16 %v555
      %v572 = vunpack.c.l.b16 %v556
      %v573 = vunpack.c.l.b16 %v557
      %v574 = vunpack.c.l.b16 %v558
      %v575 = vpack.c.b16 %v568, %v567
      %v576 = vpack.c.b16 %v570, %v569
      %v577 = vpack.c.b16 %v572, %v571
      %v578 = vpack.c.b16 %v574, %v573
      %v584 = vsel %vm255, %v549, 0
      %586 = vmatpush.bf16.msra.mxu0 0
      %587 = vmatpush.bf16.msra.mxu0 0
      %588 = vmatpush.bf16.msra.mxu0 0
      %589 = vmatpush.bf16.msra.mxu0 0
      %590 = vmatpush.bf16.msra.mxu0 %v578
      %591 = vmatpush.bf16.msra.mxu0 %v577
      %592 = vmatpush.bf16.msra.mxu0 %v576
      %593 = vmatpush.bf16.msra.mxu0 %v575
      %594 = vmatmul.bf16.gmra.mxu0 %v584
      %v595 = vpop.f32.mrf.mxu0
      %v596 = vadd.f32 0.0, %v595
      %v597 = vpop.f32.mrf.mxu0
      %v598 = vadd.f32 0.0, %v597
      %599 = vdwg.mxu0
      %v608 = vunpack.c.l.b16 %v539
      %v609 = vunpack.c.l.b16 %v540
      %v610 = vunpack.c.l.b16 %v541
      %v611 = vunpack.c.l.b16 %v542
      %v612 = vunpack.c.l.b16 %v543
      %v613 = vunpack.c.l.b16 %v544
      %v614 = vunpack.c.l.b16 %v545
      %v615 = vunpack.c.l.b16 %v546
      %v616 = vpack.c.b16 %v609, %v608
      %v617 = vpack.c.b16 %v611, %v610
      %v618 = vpack.c.b16 %v613, %v612
      %v619 = vpack.c.b16 %v615, %v614
      %v625 = vsel %vm255, %v538, 0
      %627 = vmatpush.bf16.msra.mxu0 0
      %628 = vmatpush.bf16.msra.mxu0 0
      %629 = vmatpush.bf16.msra.mxu0 0
      %630 = vmatpush.bf16.msra.mxu0 0
      %631 = vmatpush.bf16.msra.mxu0 %v619
      %632 = vmatpush.bf16.msra.mxu0 %v618
      %633 = vmatpush.bf16.msra.mxu0 %v617
      %634 = vmatpush.bf16.msra.mxu0 %v616
      %635 = vmatmul.bf16.gmra.mxu0 %v625
      %v636 = vpop.f32.mrf.mxu0
      %v637 = vadd.f32 %v596, %v636
      %v638 = vpop.f32.mrf.mxu0
      %v639 = vadd.f32 %v598, %v638
      %640 = vdwg.mxu0
      %v641 = vld [vmem:[#allocation3 + $0x2] sm:$0xff]
      %v642 = vld [vmem:[#allocation3 + $0xa] sm:$0xff]
      %v643 = vpack.c.bf16 %v642, %v641
      %s644 = scalar_lea.vmem %s3, 64
      %v645 = vld [vmem:[%s644] sm:$0xf]
      %v646 = vld [vmem:[%s644 + $0x4] sm:$0xf]
      %v647 = vld [vmem:[%s644 + $0x8] sm:$0xf]
      %v648 = vld [vmem:[%s644 + $0xc] sm:$0xf]
      %v649 = vld [vmem:[%s644 + $0x10] sm:$0xf]
      %v650 = vld [vmem:[%s644 + $0x14] sm:$0xf]
      %v651 = vld [vmem:[%s644 + $0x18] sm:$0xf]
      %v652 = vld [vmem:[%s644 + $0x1c] sm:$0xf]
      %v661 = vunpack.c.l.b16 %v645
      %v662 = vunpack.c.l.b16 %v646
      %v663 = vunpack.c.l.b16 %v647
      %v664 = vunpack.c.l.b16 %v648
      %v665 = vunpack.c.l.b16 %v649
      %v666 = vunpack.c.l.b16 %v650
      %v667 = vunpack.c.l.b16 %v651
      %v668 = vunpack.c.l.b16 %v652
      %v669 = vpack.c.b16 %v662, %v661
      %v670 = vpack.c.b16 %v664, %v663
      %v671 = vpack.c.b16 %v666, %v665
      %v672 = vpack.c.b16 %v668, %v667
      %v678 = vsel %vm255, %v643, 0
      %680 = vmatpush.bf16.msra.mxu0 0
      %681 = vmatpush.bf16.msra.mxu0 0
      %682 = vmatpush.bf16.msra.mxu0 0
      %683 = vmatpush.bf16.msra.mxu0 0
      %684 = vmatpush.bf16.msra.mxu0 %v672
      %685 = vmatpush.bf16.msra.mxu0 %v671
      %686 = vmatpush.bf16.msra.mxu0 %v670
      %687 = vmatpush.bf16.msra.mxu0 %v669
      %688 = vmatmul.bf16.gmra.mxu0 %v678
      %v689 = vpop.f32.mrf.mxu0
      %v690 = vadd.f32 0.0, %v689
      %v691 = vpop.f32.mrf.mxu0
      %v692 = vadd.f32 0.0, %v691
      %693 = vdwg.mxu0
      %v694 = vadd.f32 %v637, %v690
      %v695 = vadd.f32 %v639, %v692
      %v696 = vld [vmem:[%s4 + $0x1] sm:$0x1]
      %v697 = vperm.slane %v696, 0
      %v698 = vadd.f32 %v694, %v697
      %v699 = vadd.f32 %v695, %v697
      %vm700 = vcmp.ge.f32.partialorder %v698, 0.0
      %vm701 = vcmp.ge.f32.partialorder %v699, 0.0
      %v702 = vmul.f32 %v698, 0.2
      %v703 = vmul.f32 %v699, 0.2
      %v704 = vsel %vm700, %v698, %v702
      %v705 = vsel %vm701, %v699, %v703
      %708 = vrot.lane.b32.xlu0 %v532, 64
      %v709 = vpop.permute.xlu0 %708
      %710 = vrot.lane.b32.xlu0 %v533, 64
      %v711 = vpop.permute.xlu0 %710
      %v714 = vadd.f32 %v704, %v709
      %v715 = vadd.f32 %v705, %v711
      %v716 = vadd.f32 %v246, %v714
      %v717 = vadd.f32 %v247, %v715
      %720 = vrot.lane.b32.xlu0 %v714, 64
      %v721 = vpop.permute.xlu0 %720
      %722 = vrot.lane.b32.xlu0 %v715, 64
      %v723 = vpop.permute.xlu0 %722
      %v726 = vsel %vm255, %v716, %v721
      %v727 = vsel %vm255, %v717, %v723
      %728 = vst [vmem:[%s244] sm:$0xff] %v726
      %729 = vst [vmem:[%s244 + $0x8] sm:$0xff] %v727
      %p730 = scmp.lt.s32.totalorder %s16, 1
      %s731 = scalar_select %p730, %s16, 1
      %s732 = smul.addr %s731, 2
      %s733 = smul.addr %s732, 8
      %s734 = scalar_lea.vmem %s5, %s733
      // Predicated region
      $region41: #{splitting_block_nhwc.1} parent=39 // pred_check
        %p735 = pneg %p149
      $region42: #{splitting_block_nhwc.1} parent=39 // pred_check_branch
        %737 = sbr.rel (%p735) target = $region44
      $region43: #{splitting_block_nhwc.1} parent=39 // pred_region
        _
      $region44: #{splitting_block_nhwc.1} parent=39 // pred_fallthru
        _
    $region40: #{splitting_block_nhwc.1} parent=5 // pred_fallthru
      _
    %p738 = scmp.le.s32.totalorder 2, %s11
    // Predicated region
    $region45: #{splitting_block_nhwc.1} parent=5 // pred_check
      %p739 = pneg %p738
    $region46: #{splitting_block_nhwc.1} parent=5 // pred_check_branch
      %741 = sbr.rel (%p739) target = $region48
    $region47: #{splitting_block_nhwc.1} parent=5 // pred_region
      %s742 = ssub.s32 %s11, 2
      // Predicated region
      $region49: #{splitting_block_nhwc.1} parent=47 // pred_check
        %p743 = pneg %p155
      $region50: #{splitting_block_nhwc.1} parent=47 // pred_check_branch
        %745 = sbr.rel (%p743) target = $region52
      $region51: #{splitting_block_nhwc.1} parent=47 // pred_region
        %p746 = scmp.lt.s32.totalorder %s17, 1
        %s747 = scalar_select %p746, %s17, 1
        %s748 = smul.addr %s747, 2
        %s749 = smul.addr %s748, 8
        %s750 = scalar_lea.vmem %s5, %s749
      $region52: #{splitting_block_nhwc.1} parent=47 // pred_fallthru
        _
    $region48: #{splitting_block_nhwc.1} parent=5 // pred_fallthru
      _
  $region6: #{splitting_block_nhwc.1} parent=0 // loop_footer
    %s15 = sadd.s32 1, %s11
  $region7: #{splitting_block_nhwc.1} parent=0 // loop_footer_branch
    %10 = sbr.rel target = $region3
  $region8: #{splitting_block_nhwc.1} parent=0 // loop_exit
    _

</llo_original>
